<compile_context>
chip_gen: v6e
topology: v6e:2x2x1
jax: 0.10.0
libtpu: 0.0.40
codegen_flags: <defaults>
</compile_context>

<pallas_src>
import functools

import jax
import jax.numpy as jnp
from jax.experimental import pallas as pl
from jax.experimental.pallas import tpu as pltpu


def _round_up(x, m):
    return ((x + m - 1) // m) * m


def _avg_linear_kernel(x_ref, w_ref, b_ref, o_ref, acc_ref, *, inv_t, rem_t):
    # x_ref  : (tb, tt, D)  streamed input tile
    # w_ref  : (D, C)       pre-transposed weight, resident across the grid
    # b_ref  : (1, C)       bias, resident
    # o_ref  : (tb, C)      output tile (same block revisited across the T axis)
    # acc_ref: (tb, D) f32  running sum over the sequence axis
    t = pl.program_id(1)
    nt = pl.num_programs(1)

    @pl.when(t == 0)
    def _init():
        acc_ref[...] = jnp.zeros_like(acc_ref)

    if rem_t == 0:
        # T divides tt: every tile is full.
        acc_ref[...] += jnp.sum(x_ref[...], axis=1, dtype=jnp.float32)
    else:
        # Ragged last T tile: only the first rem_t rows are real data.  rem_t is
        # static, so this is a cheap static partial-sublane slice (no iota /
        # select temporaries, and no garbage ever reaches the accumulator).
        @pl.when(t != nt - 1)
        def _full_tile():
            acc_ref[...] += jnp.sum(x_ref[...], axis=1, dtype=jnp.float32)

        @pl.when(t == nt - 1)
        def _ragged_tile():
            acc_ref[...] += jnp.sum(x_ref[:, :rem_t, :], axis=1, dtype=jnp.float32)

    @pl.when(t == nt - 1)
    def _finalize():
        xm = acc_ref[...] * inv_t                      # (tb, D) f32 mean over the real T
        # Feed the MXU in the weight's native dtype; accumulate in f32.
        lhs = xm if w_ref.dtype == jnp.float32 else xm.astype(w_ref.dtype)
        y = jnp.dot(lhs, w_ref[...], preferred_element_type=jnp.float32)  # (tb, C)
        o_ref[...] = (y + b_ref[...].astype(jnp.float32)).astype(o_ref.dtype)


def _choose_tiles(B, T, D, itemsize):
    """Co-derive (tb, tt) from a per-buffer VMEM budget."""
    sub = {4: 8, 2: 16, 1: 32}.get(itemsize, 8)   # sublane packing of the tt axis
    target = 8 << 20                              # ~8 MiB per x buffer (x2 double-buffered)

    # Batch tile: full B when tiny; otherwise a multiple of 8 chosen so the B
    # grid axis has >= 2 blocks (keeps both v7x TensorCores busy).
    if B <= 8:
        tb = B
    else:
        tb = min(128, _round_up(pl.cdiv(B, 2), 8))

    def xbytes(tb_, tt_):
        return tb_ * tt_ * D * itemsize

    if xbytes(tb, T) <= target:
        tt = T                                    # whole sequence per step (best case)
        if B > 8:
            # tt saturated: widen tb with the leftover budget, still >= 2 B blocks.
            budget_tb = max(8, (target // (T * D * itemsize)) // 8 * 8)
            tb = max(tb, min(budget_tb, _round_up(pl.cdiv(B, 2), 8)))
    else:
        # Grow tt first (long contiguous DMA runs per batch row).
        tt = max(sub, (target // (tb * D * itemsize)) // sub * sub)
        if xbytes(tb, tt) > target and tb > 8:
            # Even the minimum tt overshoots (huge D): shrink tb instead.
            tb = max(8, (target // (tt * D * itemsize)) // 8 * 8)
        tt = min(tt, T)
    return tb, tt


def averaging_linear(x, weight, bias, *, tb=None, tt=None):
    """x: (B, T, D); weight: (C, D); bias: (C,) -> (B, C) float32."""
    B, T, D = x.shape
    C, D2 = weight.shape
    assert D == D2 and bias.shape == (C,)

    tb_auto, tt_auto = _choose_tiles(B, T, D, x.dtype.itemsize)
    tb = tb_auto if tb is None else tb
    tt = tt_auto if tt is None else tt

    rem_t = T % tt
    grid = (pl.cdiv(B, tb), pl.cdiv(T, tt))       # reduction axis (T) last; no padding of x

    w_t = weight.T                                # one-time (C,D)->(D,C); no in-kernel relayout
    bias2d = bias.reshape(1, C)

    kernel = functools.partial(_avg_linear_kernel, inv_t=1.0 / T, rem_t=rem_t)

    # Explicit scoped-VMEM budget: 2x double-buffered x block + resident
    # W/bias (x2) + output block (x2) + accumulator + generous slack.  Needed on
    # v5e (16 MiB default) once blocks grow; comfortably under v7x's 64 MiB.
    x_block_bytes = tb * tt * D * x.dtype.itemsize
    resident = 2 * (D * C * weight.dtype.itemsize + C * bias.dtype.itemsize)
    other = 2 * tb * C * 4 + tb * D * 4
    vmem_limit = int(min(max(2 * x_block_bytes + resident + other + (8 << 20),
                             32 << 20), 96 << 20))

    out = pl.pallas_call(
        kernel,
        out_shape=jax.ShapeDtypeStruct((B, C), jnp.float32),
        grid_spec=pltpu.PrefetchScalarGridSpec(
            num_scalar_prefetch=0,
            grid=grid,
            in_specs=[
                pl.BlockSpec((tb, tt, D), lambda b, t: (b, t, 0)),  # streamed x
                pl.BlockSpec((D, C), lambda b, t: (0, 0)),          # W^T resident
                pl.BlockSpec((1, C), lambda b, t: (0, 0)),          # bias resident
            ],
            out_specs=pl.BlockSpec((tb, C), lambda b, t: (b, 0)),
            scratch_shapes=[pltpu.VMEM((tb, D), jnp.float32)],
        ),
        compiler_params=pltpu.CompilerParams(
            dimension_semantics=("parallel", "arbitrary"),
            vmem_limit_bytes=vmem_limit),
    )(x, w_t, bias2d)

    return out


if __name__ == "__main__":
    # Small shapes consistent with the module: input_dim=40, num_classes=10.
    B, T, D, C = 2, 8, 40, 10

    key = jax.random.PRNGKey(0)
    kx, kw, kb, kx2 = jax.random.split(key, 4)

    x = jax.random.normal(kx, (B, T, D), dtype=jnp.float32)

    # Deterministic parameter init mimicking nn.Linear (uniform +/- 1/sqrt(D)).
    bound = 1.0 / (D ** 0.5)
    weight = jax.random.uniform(kw, (C, D), minval=-bound, maxval=bound,
                                dtype=jnp.float32)
    bias = jax.random.uniform(kb, (C,), minval=-bound, maxval=bound,
                              dtype=jnp.float32)

    out = jax.block_until_ready(averaging_linear(x, weight, bias))
    ref = x.mean(axis=1) @ weight.T + bias
    assert out.shape == (B, C)
    assert jnp.allclose(out, ref, atol=1e-5, rtol=1e-5)

    # Exercise the ragged-tile paths (B and T not multiples of the tiles,
    # no padding of x anywhere).
    B2, T2 = 10, 13
    x2 = jax.random.normal(kx2, (B2, T2, D), dtype=jnp.float32)
    out2 = jax.block_until_ready(averaging_linear(x2, weight, bias, tb=8, tt=8))
    ref2 = x2.mean(axis=1) @ weight.T + bias
    assert out2.shape == (B2, C)
    assert jnp.allclose(out2, ref2, atol=1e-5, rtol=1e-5)

    print("KERNEL_OK")
</pallas_src>

<mosaic_0001>
module attributes {stable_mosaic.version = 11 : i64} {
  func.func @_avg_linear_kernel(%arg0: i32, %arg1: i32, %arg2: memref<2x8x40xf32, #tpu.memory_space<vmem>>, %arg3: memref<40x10xf32, #tpu.memory_space<vmem>>, %arg4: memref<1x10xf32, #tpu.memory_space<vmem>>, %arg5: memref<2x10xf32, #tpu.memory_space<vmem>>, %arg6: memref<2x40xf32, #tpu.memory_space<vmem>>) attributes {dimension_semantics = [#tpu.dimension_semantics<parallel>, #tpu.dimension_semantics<arbitrary>], iteration_bounds = array<i64: 1, 1>, scalar_prefetch = 0 : i64, scratch_operands = 1 : i64, tpu.core_type = #tpu.core_type<tc>, window_params = [{transform_indices = @transform_0, window_bounds = array<i64: 2, 8, 40>}, {pipeline_mode = #tpu.pipeline_mode<synchronous>, transform_indices = @transform_1, window_bounds = array<i64: 40, 10>}, {pipeline_mode = #tpu.pipeline_mode<synchronous>, transform_indices = @transform_2, window_bounds = array<i64: 1, 10>}, {transform_indices = @transform_3, window_bounds = array<i64: 2, 10>}]} {
    %c0_i32 = arith.constant 0 : i32
    %0 = arith.cmpi eq, %arg1, %c0_i32 : i32
    %1 = arith.extui %0 : i1 to i32
    %c0_i32_0 = arith.constant 0 : i32
    %2 = arith.cmpi ne, %1, %c0_i32_0 : i32
    scf.if %2 {
      %cst_9 = arith.constant 0.000000e+00 : f32
      %11 = vector.broadcast %cst_9 : f32 to vector<2x40xf32>
      %c0_10 = arith.constant 0 : index
      %c0_11 = arith.constant 0 : index
      %12 = vector.load %arg6[%c0_10, %c0_11] : memref<2x40xf32, #tpu.memory_space<vmem>>, vector<2x40xf32>
      tpu.vector_store %arg6[%c0_10, %c0_11], %11 {strides = array<i32>} : memref<2x40xf32, #tpu.memory_space<vmem>>, vector<2x40xf32>,
    } else {
    }
    %c0 = arith.constant 0 : index
    %c0_1 = arith.constant 0 : index
    %3 = vector.load %arg6[%c0, %c0_1] : memref<2x40xf32, #tpu.memory_space<vmem>>, vector<2x40xf32>
    %c0_2 = arith.constant 0 : index
    %c0_3 = arith.constant 0 : index
    %c0_4 = arith.constant 0 : index
    %4 = vector.load %arg2[%c0_2, %c0_3, %c0_4] : memref<2x8x40xf32, #tpu.memory_space<vmem>>, vector<2x8x40xf32>
    %cst = arith.constant dense<0.000000e+00> : vector<2x40xf32>
    %5 = vector.multi_reduction <add>, %4, %cst [1] : vector<2x8x40xf32> to vector<2x40xf32>
    %6 = arith.addf %3, %5 : vector<2x40xf32>
    %c0_5 = arith.constant 0 : index
    %c0_6 = arith.constant 0 : index
    %7 = vector.load %arg6[%c0_5, %c0_6] : memref<2x40xf32, #tpu.memory_space<vmem>>, vector<2x40xf32>
    tpu.vector_store %arg6[%c0_5, %c0_6], %6 {strides = array<i32>} : memref<2x40xf32, #tpu.memory_space<vmem>>, vector<2x40xf32>,
    %c0_i32_7 = arith.constant 0 : i32
    %8 = arith.cmpi eq, %arg1, %c0_i32_7 : i32
    %9 = arith.extui %8 : i1 to i32
    %c0_i32_8 = arith.constant 0 : i32
    %10 = arith.cmpi ne, %9, %c0_i32_8 : i32
    scf.if %10 {
      %c0_9 = arith.constant 0 : index
      %c0_10 = arith.constant 0 : index
      %11 = vector.load %arg6[%c0_9, %c0_10] : memref<2x40xf32, #tpu.memory_space<vmem>>, vector<2x40xf32>
      %cst_11 = arith.constant 1.250000e-01 : f32
      %12 = vector.broadcast %cst_11 : f32 to vector<2x40xf32>
      %13 = arith.mulf %11, %12 : vector<2x40xf32>
      %c0_12 = arith.constant 0 : index
      %c0_13 = arith.constant 0 : index
      %14 = vector.load %arg3[%c0_12, %c0_13] : memref<40x10xf32, #tpu.memory_space<vmem>>, vector<40x10xf32>
      %cst_14 = arith.constant dense<0.000000e+00> : vector<2x10xf32>
      %15 = tpu.matmul %13, %14, %cst_14 {dimension_numbers = #tpu.dot_dimension_numbers<[1], [0], [0], [1], [0, 0, 1, 1], [], []>} : vector<2x40xf32>, vector<40x10xf32>, vector<2x10xf32> -> vector<2x10xf32>
      %c0_15 = arith.constant 0 : index
      %c0_16 = arith.constant 0 : index
      %16 = vector.load %arg4[%c0_15, %c0_16] : memref<1x10xf32, #tpu.memory_space<vmem>>, vector<1x10xf32>
      %17 = vector.broadcast %16 : vector<1x10xf32> to vector<2x10xf32>
      %18 = arith.addf %15, %17 : vector<2x10xf32>
      %c0_17 = arith.constant 0 : index
      %c0_18 = arith.constant 0 : index
      %19 = vector.load %arg5[%c0_17, %c0_18] : memref<2x10xf32, #tpu.memory_space<vmem>>, vector<2x10xf32>
      tpu.vector_store %arg5[%c0_17, %c0_18], %18 {strides = array<i32>} : memref<2x10xf32, #tpu.memory_space<vmem>>, vector<2x10xf32>,
    } else {
    }
    return
  }
  func.func @transform_0(%arg0: i32, %arg1: i32) -> (i32, i32, i32) {
    %c0_i32 = arith.constant 0 : i32
    %c0_i32_0 = arith.constant 0 : i32
    return %arg0, %arg1, %c0_i32 : i32, i32, i32
  }
  func.func @transform_1(%arg0: i32, %arg1: i32) -> (i32, i32) {
    %c0_i32 = arith.constant 0 : i32
    %c0_i32_0 = arith.constant 0 : i32
    %c0_i32_1 = arith.constant 0 : i32
    return %c0_i32, %c0_i32_0 : i32, i32
  }
  func.func @transform_2(%arg0: i32, %arg1: i32) -> (i32, i32) {
    %c0_i32 = arith.constant 0 : i32
    %c0_i32_0 = arith.constant 0 : i32
    %c0_i32_1 = arith.constant 0 : i32
    return %c0_i32, %c0_i32_0 : i32, i32
  }
  func.func @transform_3(%arg0: i32, %arg1: i32) -> (i32, i32) {
    %c0_i32 = arith.constant 0 : i32
    %c0_i32_0 = arith.constant 0 : i32
    return %arg0, %c0_i32 : i32, i32
  }
}

</mosaic_0001>

<llo_original>
// kernel: tpu_custom_call.1
$region0: #{tpu_custom_call.1}
  #allocation0 [shape = 'u32[]', space=smem, size = 0x4, offset = 0x4, fixed_abs, tag = 'smem constant byte address 0x4 - core index']
  #allocation1 [shape = 'u32[144,128]{1,0:T(1,128)}', space=vmem, size = 0x12000, scoped, tag = 'internal scratch']
  #allocation2 [shape = 'f32[2,40]{1,0:T(2,128)}', space=vmem, size = 0x400, scoped, tag = 'scratch operand']
  %s0 = inlined_call_operand.vmem [shape: f32[2,8,40], index: 0, kind: input, shape index: {}]
  %s1 = inlined_call_operand.vmem [shape: f32[40,10], index: 1, kind: input, shape index: {}]
  %s2 = inlined_call_operand.vmem [shape: f32[1,10], index: 2, kind: input, shape index: {}]
  %s3 = inlined_call_operand.hbm [shape: f32[2,10], index: 3, kind: output, shape index: {}]
  %s4 = sld [smem:[#allocation0]]
  $region30: #{tpu_custom_call.1} parent=0
    _
  %s6 = ssub.s32 1, %s4
  %s7 = scalar_select 0, %s6, %s4
  $region1: #{tpu_custom_call.1} parent=0
    #allocation3 [shape = 'u8[1024]{0}', space=vmem, size = 0x400, scoped, tag = 'output window, operand 0, single buffered']
    #allocation4 [shape = 's32[1]{0}', space=sflag, size = 0x4, scoped, tag = 'scoped memory for tpu_custom_call.1']
    %8 = vsyncpa [#allocation4], 0
    // Predicated region
    $region2: #{tpu_custom_call.1} parent=1 // pred_check
      _
    $region3: #{tpu_custom_call.1} parent=1 // pred_check_branch
      %10 = sbr.rel (0) target = $region5
    $region4: #{tpu_custom_call.1} parent=1 // pred_region
      _
    $region5: #{tpu_custom_call.1} parent=1 // pred_fallthru
      _
    // Predicated region
    $region6: #{tpu_custom_call.1} parent=1 // pred_check
      _
    $region7: #{tpu_custom_call.1} parent=1 // pred_check_branch
      %12 = sbr.rel (0) target = $region9
    $region8: #{tpu_custom_call.1} parent=1 // pred_region
      _
    $region9: #{tpu_custom_call.1} parent=1 // pred_fallthru
      _
    // Predicated region
    $region10: #{tpu_custom_call.1} parent=1 // pred_check
      _
    $region11: #{tpu_custom_call.1} parent=1 // pred_check_branch
      %14 = sbr.rel (0) target = $region13
    $region12: #{tpu_custom_call.1} parent=1 // pred_region
      _
    $region13: #{tpu_custom_call.1} parent=1 // pred_fallthru
      _
    %p15 = scmp.eq.s32.totalorder 0, 0
    // Predicated region
    $region14: #{tpu_custom_call.1} parent=1 // pred_check
      %p16 = pneg %p15
    $region15: #{tpu_custom_call.1} parent=1 // pred_check_branch
      %18 = sbr.rel (%p16) target = $region17
    $region16: #{tpu_custom_call.1} parent=1 // pred_region
      %vm19 = vcmask 320512
      %20 = vst.msk [vmem:[#allocation2] sm:$0x3] %vm19, 0.0
    $region17: #{tpu_custom_call.1} parent=1 // pred_fallthru
      _
    %v21 = vld [vmem:[#allocation2] sm:$0x3]
    %v22 = vld [vmem:[%s0] sm:$0xff]
    %v23 = vld [vmem:[%s0 + $0x8] sm:$0xff]
    %vm24 = vcmask 326656
    %v25 = vsel %vm24, %v22, 0.0
    %v26 = vrot.slane %v25, 4
    %v27 = vadd.f32 %v25, %v26
    %v28 = vrot.slane %v27, 2
    %v29 = vadd.f32 %v27, %v28
    %v30 = vrot.slane %v29, 1
    %v31 = vadd.f32 %v29, %v30
    %v32 = vsel %vm24, %v23, 0.0
    %v33 = vrot.slane %v32, 4
    %v34 = vadd.f32 %v32, %v33
    %v35 = vrot.slane %v34, 2
    %v36 = vadd.f32 %v34, %v35
    %v37 = vrot.slane %v36, 1
    %v38 = vadd.f32 %v36, %v37
    %vm41 = vcmask 1041409
    %v42 = vsel %vm41, %v38, %v31
    %v44 = vadd.f32 %v21, %v42
    %vm45 = vcmask 320512
    %46 = vst.msk [vmem:[#allocation2] sm:$0x3] %vm45, %v44
    // Predicated region
    $region18: #{tpu_custom_call.1} parent=1 // pred_check
      %p47 = pneg %p15
    $region19: #{tpu_custom_call.1} parent=1 // pred_check_branch
      %49 = sbr.rel (%p47) target = $region21
    $region20: #{tpu_custom_call.1} parent=1 // pred_region
      %v50 = vld [vmem:[#allocation2] sm:$0x3]
      %v51 = vmul.f32 %v50, 0.125
      %v52 = vld [vmem:[%s1] sm:$0xff]
      %v53 = vld [vmem:[%s1 + $0x8] sm:$0xff]
      %v54 = vld [vmem:[%s1 + $0x10] sm:$0xff]
      %v55 = vld [vmem:[%s1 + $0x18] sm:$0xff]
      %v56 = vld [vmem:[%s1 + $0x20] sm:$0xff]
      %v57 = vld [vmem:[%s2] sm:$0x1]
      %v59 = vlaneseq
      %v60 = vshrl.u32 %v59, 7
      %v61 = vsub.s32 0, %v60
      %v62 = vrot.slane %v57, %v61
      %v65 = vsel %vm24, %v51, 0
      %67 = vmatprep.subr.mxu0 0.0
      %68 = vmatpush1.msra.mxu0 0.0
      %69 = vmatprep.subr.mxu0 0.0
      %70 = vmatpush1.msra.mxu0 0.0
      %71 = vmatprep.subr.mxu0 0.0
      %72 = vmatpush1.msra.mxu0 0.0
      %73 = vmatprep.subr.mxu0 0.0
      %74 = vmatpush1.msra.mxu0 0.0
      %75 = vmatprep.subr.mxu0 0.0
      %76 = vmatpush1.msra.mxu0 0.0
      %77 = vmatprep.subr.mxu0 0.0
      %78 = vmatpush1.msra.mxu0 0.0
      %79 = vmatprep.subr.mxu0 0.0
      %80 = vmatpush1.msra.mxu0 0.0
      %81 = vmatprep.subr.mxu0 0.0
      %82 = vmatpush1.msra.mxu0 0.0
      %83 = vmatprep.subr.mxu0 0.0
      %84 = vmatpush1.msra.mxu0 0.0
      %85 = vmatprep.subr.mxu0 0.0
      %86 = vmatpush1.msra.mxu0 0.0
      %87 = vmatprep.subr.mxu0 0.0
      %88 = vmatpush1.msra.mxu0 0.0
      %89 = vmatprep.subr.mxu0 0.0
      %90 = vmatpush1.msra.mxu0 %v56
      %91 = vmatprep.subr.mxu0 0.0
      %92 = vmatpush1.msra.mxu0 %v55
      %93 = vmatprep.subr.mxu0 0.0
      %94 = vmatpush1.msra.mxu0 %v54
      %95 = vmatprep.subr.mxu0 0.0
      %96 = vmatpush1.msra.mxu0 %v53
      %97 = vmatprep.subr.mxu0 0.0
      %98 = vmatpush1.msra.mxu0 %v52
      %99 = vmatprep.subr.mxu0 0.0
      %100 = vmatpush2.msra.mxu0 0.0
      %101 = vmatprep.subr.mxu0 0.0
      %102 = vmatpush2.msra.mxu0 0.0
      %103 = vmatprep.subr.mxu0 0.0
      %104 = vmatpush2.msra.mxu0 0.0
      %105 = vmatprep.subr.mxu0 0.0
      %106 = vmatpush2.msra.mxu0 0.0
      %107 = vmatprep.subr.mxu0 0.0
      %108 = vmatpush2.msra.mxu0 0.0
      %109 = vmatprep.subr.mxu0 0.0
      %110 = vmatpush2.msra.mxu0 0.0
      %111 = vmatprep.subr.mxu0 0.0
      %112 = vmatpush2.msra.mxu0 0.0
      %113 = vmatprep.subr.mxu0 0.0
      %114 = vmatpush2.msra.mxu0 0.0
      %115 = vmatprep.subr.mxu0 0.0
      %116 = vmatpush2.msra.mxu0 0.0
      %117 = vmatprep.subr.mxu0 0.0
      %118 = vmatpush2.msra.mxu0 0.0
      %119 = vmatprep.subr.mxu0 0.0
      %120 = vmatpush2.msra.mxu0 0.0
      %121 = vmatprep.subr.mxu0 0.0
      %122 = vmatpush2.msra.mxu0 0.0
      %123 = vmatprep.subr.mxu0 0.0
      %124 = vmatpush2.msra.mxu0 0.0
      %125 = vmatprep.subr.mxu0 0.0
      %126 = vmatpush2.msra.mxu0 0.0
      %127 = vmatprep.subr.mxu0 0.0
      %128 = vmatpush2.msra.mxu0 0.0
      %129 = vmatprep.subr.mxu0 0.0
      %130 = vmatpush2.msra.mxu0 0.0
      %131 = vmatprep.mubr.f32.mxu0 0.0
      %132 = vmatmul.mubr.f32.gmra.mxu0 %v65
      %v133 = vpop.f32.mrf.mxu0
      %v134 = vadd.f32 %v62, %v133
      %v135 = vpop.f32.mrf.mxu0
      %136 = vdwg.mxu0
      %vm137 = vcmask 74752
      %138 = vst.msk [vmem:[#allocation3] sm:$0x3] %vm137, %v134
    $region21: #{tpu_custom_call.1} parent=1 // pred_fallthru
      _
    // Predicated region
    $region22: #{tpu_custom_call.1} parent=1 // pred_check
      _
    $region23: #{tpu_custom_call.1} parent=1 // pred_check_branch
      %140 = sbr.rel (0) target = $region25
    $region24: #{tpu_custom_call.1} parent=1 // pred_region
      %s142 = ssub.s32 32, 32
      %143 = vsyncadd [#allocation4], %s142
      %s145 = sshll.u32 [#allocation3], 4
      %s146 = int_to_ptr.vmem [resolvable:$true] %s145
      %148 = dma.vmem_to_hbm [thread:$0]  %s146, 32, %s3, [#allocation4]
    $region25: #{tpu_custom_call.1} parent=1 // pred_fallthru
      _
    // Predicated region
    $region26: #{tpu_custom_call.1} parent=1 // pred_check
      _
    $region27: #{tpu_custom_call.1} parent=1 // pred_check_branch
      %150 = sbr.rel (0) target = $region29
    $region28: #{tpu_custom_call.1} parent=1 // pred_region
      %151 = dma.done [#allocation4], 32
    $region29: #{tpu_custom_call.1} parent=1 // pred_fallthru
      _
    %152 = vsyncpa [#allocation4], 1

</llo_original>
